<compile_context>
chip_gen: v5e
topology: v5e:2x2
jax: 0.10.0
libtpu: 0.0.40
codegen_flags: <defaults>
</compile_context>

<pallas_src>
import functools

import jax
import jax.numpy as jnp
from jax.experimental import pallas as pl
from jax.experimental.pallas import tpu as pltpu

_HIDDEN = 256
_LANE = 128
_SUBLANE = 8
_MAX_TB = 2048


def _round_up(x, m):
    return (x + m - 1) // m * m


def _cdiv(a, b):
    return -(-a // b)


def head_kernel(x_ref, w1_ref, b1_ref, w2_ref, b2_ref, o_ref):
    # Cast x in-register to the weight compute dtype (bf16 by default): the
    # wrapper never does a separate HBM cast pass over x.
    x = x_ref[...].astype(w1_ref.dtype)
    # Linear(E, 256): MXU matmul with f32 accumulation.
    h = jnp.dot(x, w1_ref[...], preferred_element_type=jnp.float32)
    h = jnp.maximum(h + b1_ref[...], 0.0)            # + bias, ReLU
    # Dropout(0.5): identity at inference time.
    # Linear(256, C): second MXU matmul, f32 accumulation.
    out = jnp.dot(h.astype(w2_ref.dtype), w2_ref[...],
                  preferred_element_type=jnp.float32)
    o_ref[...] = (out + b2_ref[...]).astype(o_ref.dtype)


@functools.lru_cache(maxsize=1)
def _vmem_limit_bytes():
    """Scoped VMEM limit derived from physical VMEM (v5e/v6e: 128 MiB, v7x: 64 MiB)."""
    try:
        phys = int(pltpu.get_tpu_info().vmem_capacity_bytes)
    except Exception:
        phys = 64 * 1024 * 1024  # conservative (v7x-sized) fallback
    return max(32 * 1024 * 1024, min(phys * 3 // 4, 100 * 1024 * 1024))


def _choose_batch_tile(B, per_row_bytes, vmem_budget):
    """Batch tile: multiple of 16 sublanes, tail pad < one tile, VMEM-bounded,
    and >= 2 (>= 4 for large B) grid steps so v7x megacore can split the batch."""
    align = 16 if B >= 16 else _SUBLANE
    B_a = _round_up(B, align)
    tb_cap = max(align, (vmem_budget // max(per_row_bytes, 1)) // align * align)
    tb = min(B_a, _MAX_TB, tb_cap)
    steps = _cdiv(B_a, tb)
    if B_a >= 128:
        steps = max(steps, 2)
    if B_a >= 1024:
        steps = max(steps, 4)
    return max(align, _round_up(_cdiv(B_a, steps), align))


def prepare_head_params(w1, b1, w2, b2, *, compute_dtype=jnp.bfloat16):
    """One-time parameter prep (call once, reuse across forward calls).

    Reshapes biases to (1, dim) f32, casts matmul weights to the MXU compute
    dtype, and pads the classifier dim only when C >= 128 (keeping small C
    compact minimizes output-writeback HBM bytes)."""
    E, H = w1.shape
    C = w2.shape[1]
    C_out = C if C < _LANE else _round_up(C, _LANE)
    w2p = jnp.pad(w2, ((0, 0), (0, C_out - C))) if C_out != C else w2
    b2p = jnp.reshape(b2, (1, C))
    if C_out != C:
        b2p = jnp.pad(b2p, ((0, 0), (0, C_out - C)))
    return (w1.astype(compute_dtype),
            jnp.reshape(b1, (1, H)).astype(jnp.float32),
            w2p.astype(compute_dtype),
            b2p.astype(jnp.float32))


def model_head_forward(x, params, *, num_classes=None, block_b=None):
    """Forward pass. x: [B, E] (native dtype, cast happens in-kernel).
    params: output of prepare_head_params. Returns [B, num_classes] float32."""
    w1, b1, w2, b2 = params
    B, E = x.shape
    H = w1.shape[1]
    C_out = w2.shape[1]
    C = num_classes if num_classes is not None else C_out

    # VMEM budget -> batch tile size.
    vmem_limit = _vmem_limit_bytes()
    weight_bytes = 2 * (w1.size * w1.dtype.itemsize + b1.size * 4
                        + w2.size * w2.dtype.itemsize + b2.size * 4)
    per_row = (2 * E * x.dtype.itemsize     # double-buffered x block
               + 2 * C_out * 4              # double-buffered out block (f32)
               + 6 * H + 2 * E)             # in-kernel intermediates (h, casts)
    budget = max(1 << 20, vmem_limit - weight_bytes - (4 << 20))
    if block_b is not None:
        TB = max(_SUBLANE, _round_up(block_b, _SUBLANE))
    else:
        TB = _choose_batch_tile(B, per_row, budget)
    B_pad = _round_up(B, TB)

    # Zero-pad only the ragged batch tail (no-op when B is tile-aligned); the
    # padded rows are < one tile by construction and sliced off afterwards.
    xp = jnp.pad(x, ((0, B_pad - B), (0, 0))) if B_pad != B else x

    grid = (B_pad // TB,)
    out = pl.pallas_call(
        head_kernel,
        out_shape=jax.ShapeDtypeStruct((B_pad, C_out), jnp.float32),
        grid_spec=pl.GridSpec(
            grid=grid,
            in_specs=[
                pl.BlockSpec((TB, E), lambda i: (i, 0)),      # x: batch-tiled, pipelined
                pl.BlockSpec((E, H), lambda i: (0, 0)),       # w1: VMEM-resident
                pl.BlockSpec((1, H), lambda i: (0, 0)),       # b1: resident
                pl.BlockSpec((H, C_out), lambda i: (0, 0)),   # w2: resident
                pl.BlockSpec((1, C_out), lambda i: (0, 0)),   # b2: resident
            ],
            out_specs=pl.BlockSpec((TB, C_out), lambda i: (i, 0)),
        ),
        compiler_params=pltpu.CompilerParams(
            dimension_semantics=("parallel",),   # shard batch grid across TCs on v7x
            vmem_limit_bytes=vmem_limit,
        ),
    )(xp, w1, b1, w2, b2)

    if B_pad != B or C_out != C:
        out = out[:B, :C]
    return out


def init_params(key, embedding_dim, num_classes, hidden=_HIDDEN):
    # PyTorch-style init: U(-1/sqrt(fan_in), 1/sqrt(fan_in))
    k1, k2, k3, k4 = jax.random.split(key, 4)
    bound1 = 1.0 / jnp.sqrt(embedding_dim)
    bound2 = 1.0 / jnp.sqrt(hidden)
    w1 = jax.random.uniform(k1, (embedding_dim, hidden), jnp.float32, -bound1, bound1)
    b1 = jax.random.uniform(k2, (1, hidden), jnp.float32, -bound1, bound1)
    w2 = jax.random.uniform(k3, (hidden, num_classes), jnp.float32, -bound2, bound2)
    b2 = jax.random.uniform(k4, (1, num_classes), jnp.float32, -bound2, bound2)
    return w1, b1, w2, b2


def _ref(x, w1, b1, w2, b2, compute_dtype):
    # Pure-JAX reference with the same dtype casts (eval-mode dropout == identity).
    h = jnp.dot(x.astype(compute_dtype), w1.astype(compute_dtype),
                preferred_element_type=jnp.float32)
    h = jnp.maximum(h + b1.reshape(1, -1).astype(jnp.float32), 0.0)
    out = jnp.dot(h.astype(compute_dtype), w2.astype(compute_dtype),
                  preferred_element_type=jnp.float32)
    return out + b2.reshape(1, -1).astype(jnp.float32)


if __name__ == "__main__":
    embedding_dim = 32
    num_classes = 10
    batch = 8

    key = jax.random.PRNGKey(0)
    kx, kp = jax.random.split(key)
    x = jax.random.normal(kx, (batch, embedding_dim), jnp.float32)
    w1, b1, w2, b2 = init_params(kp, embedding_dim, num_classes)

    # f32 compute path: tight check against plain f32 reference.
    params_f32 = prepare_head_params(w1, b1, w2, b2, compute_dtype=jnp.float32)
    out_f32 = jax.block_until_ready(model_head_forward(x, params_f32))
    ref_f32 = _ref(x, w1, b1, w2, b2, jnp.float32)
    assert out_f32.shape == (batch, num_classes)
    assert jnp.allclose(out_f32, ref_f32, atol=1e-5, rtol=1e-5)

    # Default bf16-MXU path: check against a reference using the same casts.
    params_bf16 = prepare_head_params(w1, b1, w2, b2)
    out_bf16 = jax.block_until_ready(model_head_forward(x, params_bf16))
    ref_bf16 = _ref(x, w1, b1, w2, b2, jnp.bfloat16)
    assert out_bf16.shape == (batch, num_classes)
    assert jnp.allclose(out_bf16, ref_bf16, atol=5e-3, rtol=5e-3)

    # Exercise batch tiling + ragged-tail padding (auto TB -> grid of 2, small pad).
    xb = jax.random.normal(jax.random.PRNGKey(1), (600, embedding_dim), jnp.float32)
    out_big = jax.block_until_ready(model_head_forward(xb, params_bf16))
    ref_big = _ref(xb, w1, b1, w2, b2, jnp.bfloat16)
    assert out_big.shape == (600, num_classes)
    assert jnp.allclose(out_big, ref_big, atol=5e-3, rtol=5e-3)

    print("KERNEL_OK")
</pallas_src>

<mosaic_0001>
module attributes {stable_mosaic.version = 11 : i64} {
  func.func @head_kernel(%arg0: i32, %arg1: memref<8x32xf32, #tpu.memory_space<vmem>>, %arg2: memref<32x256xf32, #tpu.memory_space<vmem>>, %arg3: memref<1x256xf32, #tpu.memory_space<vmem>>, %arg4: memref<256x10xf32, #tpu.memory_space<vmem>>, %arg5: memref<1x10xf32, #tpu.memory_space<vmem>>, %arg6: memref<8x10xf32, #tpu.memory_space<vmem>>) attributes {dimension_semantics = [#tpu.dimension_semantics<parallel>], iteration_bounds = array<i64: 1>, scalar_prefetch = 0 : i64, scratch_operands = 0 : i64, tpu.core_type = #tpu.core_type<tc>, window_params = [{transform_indices = @transform_0, window_bounds = array<i64: 8, 32>}, {pipeline_mode = #tpu.pipeline_mode<synchronous>, transform_indices = @transform_1, window_bounds = array<i64: 32, 256>}, {pipeline_mode = #tpu.pipeline_mode<synchronous>, transform_indices = @transform_2, window_bounds = array<i64: 1, 256>}, {pipeline_mode = #tpu.pipeline_mode<synchronous>, transform_indices = @transform_3, window_bounds = array<i64: 256, 10>}, {pipeline_mode = #tpu.pipeline_mode<synchronous>, transform_indices = @transform_4, window_bounds = array<i64: 1, 10>}, {transform_indices = @transform_5, window_bounds = array<i64: 8, 10>}]} {
    %c0 = arith.constant 0 : index
    %c0_0 = arith.constant 0 : index
    %0 = vector.load %arg1[%c0, %c0_0] : memref<8x32xf32, #tpu.memory_space<vmem>>, vector<8x32xf32>
    %c0_1 = arith.constant 0 : index
    %c0_2 = arith.constant 0 : index
    %1 = vector.load %arg2[%c0_1, %c0_2] : memref<32x256xf32, #tpu.memory_space<vmem>>, vector<32x256xf32>
    %cst = arith.constant dense<0.000000e+00> : vector<8x256xf32>
    %2 = tpu.matmul %0, %1, %cst {dimension_numbers = #tpu.dot_dimension_numbers<[1], [0], [0], [1], [0, 0, 1, 1], [], []>} : vector<8x32xf32>, vector<32x256xf32>, vector<8x256xf32> -> vector<8x256xf32>
    %c0_3 = arith.constant 0 : index
    %c0_4 = arith.constant 0 : index
    %3 = vector.load %arg3[%c0_3, %c0_4] : memref<1x256xf32, #tpu.memory_space<vmem>>, vector<1x256xf32>
    %4 = vector.broadcast %3 : vector<1x256xf32> to vector<8x256xf32>
    %5 = arith.addf %2, %4 : vector<8x256xf32>
    %cst_5 = arith.constant 0.000000e+00 : f32
    %6 = vector.broadcast %cst_5 : f32 to vector<8x256xf32>
    %7 = arith.maximumf %5, %6 : vector<8x256xf32>
    %c0_6 = arith.constant 0 : index
    %c0_7 = arith.constant 0 : index
    %8 = vector.load %arg4[%c0_6, %c0_7] : memref<256x10xf32, #tpu.memory_space<vmem>>, vector<256x10xf32>
    %cst_8 = arith.constant dense<0.000000e+00> : vector<8x10xf32>
    %9 = tpu.matmul %7, %8, %cst_8 {dimension_numbers = #tpu.dot_dimension_numbers<[1], [0], [0], [1], [0, 0, 1, 1], [], []>} : vector<8x256xf32>, vector<256x10xf32>, vector<8x10xf32> -> vector<8x10xf32>
    %c0_9 = arith.constant 0 : index
    %c0_10 = arith.constant 0 : index
    %10 = vector.load %arg5[%c0_9, %c0_10] : memref<1x10xf32, #tpu.memory_space<vmem>>, vector<1x10xf32>
    %11 = vector.broadcast %10 : vector<1x10xf32> to vector<8x10xf32>
    %12 = arith.addf %9, %11 : vector<8x10xf32>
    %c0_11 = arith.constant 0 : index
    %c0_12 = arith.constant 0 : index
    %13 = vector.load %arg6[%c0_11, %c0_12] : memref<8x10xf32, #tpu.memory_space<vmem>>, vector<8x10xf32>
    tpu.vector_store %arg6[%c0_11, %c0_12], %12 {strides = array<i32>} : memref<8x10xf32, #tpu.memory_space<vmem>>, vector<8x10xf32>,
    return
  }
  func.func @transform_0(%arg0: i32) -> (i32, i32) {
    %c0_i32 = arith.constant 0 : i32
    %c0_i32_0 = arith.constant 0 : i32
    return %arg0, %c0_i32 : i32, i32
  }
  func.func @transform_1(%arg0: i32) -> (i32, i32) {
    %c0_i32 = arith.constant 0 : i32
    %c0_i32_0 = arith.constant 0 : i32
    %c0_i32_1 = arith.constant 0 : i32
    return %c0_i32, %c0_i32_0 : i32, i32
  }
  func.func @transform_2(%arg0: i32) -> (i32, i32) {
    %c0_i32 = arith.constant 0 : i32
    %c0_i32_0 = arith.constant 0 : i32
    %c0_i32_1 = arith.constant 0 : i32
    return %c0_i32, %c0_i32_0 : i32, i32
  }
  func.func @transform_3(%arg0: i32) -> (i32, i32) {
    %c0_i32 = arith.constant 0 : i32
    %c0_i32_0 = arith.constant 0 : i32
    %c0_i32_1 = arith.constant 0 : i32
    return %c0_i32, %c0_i32_0 : i32, i32
  }
  func.func @transform_4(%arg0: i32) -> (i32, i32) {
    %c0_i32 = arith.constant 0 : i32
    %c0_i32_0 = arith.constant 0 : i32
    %c0_i32_1 = arith.constant 0 : i32
    return %c0_i32, %c0_i32_0 : i32, i32
  }
  func.func @transform_5(%arg0: i32) -> (i32, i32) {
    %c0_i32 = arith.constant 0 : i32
    %c0_i32_0 = arith.constant 0 : i32
    return %arg0, %c0_i32 : i32, i32
  }
}

</mosaic_0001>

<llo_original>
// kernel: tpu_custom_call.1
$region0: #{tpu_custom_call.1}
  #allocation0 [shape = 'u32[]', space=smem, size = 0x4, offset = 0x4, fixed_abs, tag = 'smem constant byte address 0x4 - core index']
  #allocation1 [shape = 'u32[72,128]{1,0:T(1,128)}', space=vmem, size = 0x9000, scoped, tag = 'internal scratch']
  %s0 = inlined_call_operand.vmem [shape: f32[8,32], index: 0, kind: input, shape index: {}]
  %s1 = inlined_call_operand.vmem [shape: f32[32,256], index: 1, kind: input, shape index: {}]
  %s2 = inlined_call_operand.vmem [shape: f32[1,256], index: 2, kind: input, shape index: {}]
  %s3 = inlined_call_operand.vmem [shape: f32[256,10], index: 3, kind: input, shape index: {}]
  %s4 = inlined_call_operand.vmem [shape: f32[1,10], index: 4, kind: input, shape index: {}]
  %s5 = inlined_call_operand.hbm [shape: f32[8,10], index: 5, kind: output, shape index: {}]
  %s6 = sld [smem:[#allocation0]]
  $region30: #{tpu_custom_call.1} parent=0
    _
  %s8 = ssub.s32 1, %s6
  %s9 = scalar_select 0, %s8, %s6
  $region1: #{tpu_custom_call.1} parent=0
    #allocation2 [shape = 'u8[4096]{0}', space=vmem, size = 0x1000, scoped, tag = 'output window, operand 0, single buffered']
    #allocation3 [shape = 's32[1]{0}', space=sflag, size = 0x4, scoped, tag = 'scoped memory for tpu_custom_call.1']
    %10 = vsyncpa [#allocation3], 0
    // Predicated region
    $region2: #{tpu_custom_call.1} parent=1 // pred_check
      _
    $region3: #{tpu_custom_call.1} parent=1 // pred_check_branch
      %12 = sbr.rel (0) target = $region5
    $region4: #{tpu_custom_call.1} parent=1 // pred_region
      _
    $region5: #{tpu_custom_call.1} parent=1 // pred_fallthru
      _
    // Predicated region
    $region6: #{tpu_custom_call.1} parent=1 // pred_check
      _
    $region7: #{tpu_custom_call.1} parent=1 // pred_check_branch
      %14 = sbr.rel (0) target = $region9
    $region8: #{tpu_custom_call.1} parent=1 // pred_region
      _
    $region9: #{tpu_custom_call.1} parent=1 // pred_fallthru
      _
    // Predicated region
    $region10: #{tpu_custom_call.1} parent=1 // pred_check
      _
    $region11: #{tpu_custom_call.1} parent=1 // pred_check_branch
      %16 = sbr.rel (0) target = $region13
    $region12: #{tpu_custom_call.1} parent=1 // pred_region
      _
    $region13: #{tpu_custom_call.1} parent=1 // pred_fallthru
      _
    // Predicated region
    $region14: #{tpu_custom_call.1} parent=1 // pred_check
      _
    $region15: #{tpu_custom_call.1} parent=1 // pred_check_branch
      %18 = sbr.rel (0) target = $region17
    $region16: #{tpu_custom_call.1} parent=1 // pred_region
      _
    $region17: #{tpu_custom_call.1} parent=1 // pred_fallthru
      _
    // Predicated region
    $region18: #{tpu_custom_call.1} parent=1 // pred_check
      _
    $region19: #{tpu_custom_call.1} parent=1 // pred_check_branch
      %20 = sbr.rel (0) target = $region21
    $region20: #{tpu_custom_call.1} parent=1 // pred_region
      _
    $region21: #{tpu_custom_call.1} parent=1 // pred_fallthru
      _
    %v21 = vld [vmem:[%s0] sm:$0xff]
    %v22 = vld [vmem:[%s1] sm:$0xff]
    %v23 = vld [vmem:[%s1 + $0x8] sm:$0xff]
    %v24 = vld [vmem:[%s1 + $0x10] sm:$0xff]
    %v25 = vld [vmem:[%s1 + $0x18] sm:$0xff]
    %v26 = vld [vmem:[%s1 + $0x20] sm:$0xff]
    %v27 = vld [vmem:[%s1 + $0x28] sm:$0xff]
    %v28 = vld [vmem:[%s1 + $0x30] sm:$0xff]
    %v29 = vld [vmem:[%s1 + $0x38] sm:$0xff]
    %v30 = vld [vmem:[%s2] sm:$0x3]
    %v32 = vperm.slane %v30, 0
    %v33 = vperm.slane %v30, 1
    %vm36 = vcmask 261120
    %v38 = vsel %vm36, %v21, 0
    %40 = vmatpush.msra.mxu0 0.0
    %41 = vmatpush.msra.mxu0 0.0
    %42 = vmatpush.msra.mxu0 0.0
    %43 = vmatpush.msra.mxu0 0.0
    %44 = vmatpush.msra.mxu0 0.0
    %45 = vmatpush.msra.mxu0 0.0
    %46 = vmatpush.msra.mxu0 0.0
    %47 = vmatpush.msra.mxu0 0.0
    %48 = vmatpush.msra.mxu0 0.0
    %49 = vmatpush.msra.mxu0 0.0
    %50 = vmatpush.msra.mxu0 0.0
    %51 = vmatpush.msra.mxu0 0.0
    %52 = vmatpush.msra.mxu0 %v28
    %53 = vmatpush.msra.mxu0 %v26
    %54 = vmatpush.msra.mxu0 %v24
    %55 = vmatpush.msra.mxu0 %v22
    %56 = vmatmul.f32.gmra.mxu0 %v38
    %v57 = vpop.f32.mrf.mxu0
    %v58 = vadd.f32 %v32, %v57
    %59 = vdwg.mxu0
    %60 = vmatpush.msra.mxu0 0.0
    %61 = vmatpush.msra.mxu0 0.0
    %62 = vmatpush.msra.mxu0 0.0
    %63 = vmatpush.msra.mxu0 0.0
    %64 = vmatpush.msra.mxu0 0.0
    %65 = vmatpush.msra.mxu0 0.0
    %66 = vmatpush.msra.mxu0 0.0
    %67 = vmatpush.msra.mxu0 0.0
    %68 = vmatpush.msra.mxu0 0.0
    %69 = vmatpush.msra.mxu0 0.0
    %70 = vmatpush.msra.mxu0 0.0
    %71 = vmatpush.msra.mxu0 0.0
    %72 = vmatpush.msra.mxu0 %v29
    %73 = vmatpush.msra.mxu0 %v27
    %74 = vmatpush.msra.mxu0 %v25
    %75 = vmatpush.msra.mxu0 %v23
    %76 = vmatmul.f32.gmra.mxu0 %v38
    %v77 = vpop.f32.mrf.mxu0
    %v78 = vadd.f32 %v33, %v77
    %79 = vdwg.mxu0
    %v80 = vmax.f32 %v58, 0.0
    %v81 = vmax.f32 %v78, 0.0
    %v82 = vld [vmem:[%s3] sm:$0xff]
    %v83 = vld [vmem:[%s3 + $0x8] sm:$0xff]
    %v84 = vld [vmem:[%s3 + $0x10] sm:$0xff]
    %v85 = vld [vmem:[%s3 + $0x18] sm:$0xff]
    %v86 = vld [vmem:[%s3 + $0x20] sm:$0xff]
    %v87 = vld [vmem:[%s3 + $0x28] sm:$0xff]
    %v88 = vld [vmem:[%s3 + $0x30] sm:$0xff]
    %v89 = vld [vmem:[%s3 + $0x38] sm:$0xff]
    %v90 = vld [vmem:[%s3 + $0x40] sm:$0xff]
    %v91 = vld [vmem:[%s3 + $0x48] sm:$0xff]
    %v92 = vld [vmem:[%s3 + $0x50] sm:$0xff]
    %v93 = vld [vmem:[%s3 + $0x58] sm:$0xff]
    %v94 = vld [vmem:[%s3 + $0x60] sm:$0xff]
    %v95 = vld [vmem:[%s3 + $0x68] sm:$0xff]
    %v96 = vld [vmem:[%s3 + $0x70] sm:$0xff]
    %v97 = vld [vmem:[%s3 + $0x78] sm:$0xff]
    %v98 = vld [vmem:[%s3 + $0x80] sm:$0xff]
    %v99 = vld [vmem:[%s3 + $0x88] sm:$0xff]
    %v100 = vld [vmem:[%s3 + $0x90] sm:$0xff]
    %v101 = vld [vmem:[%s3 + $0x98] sm:$0xff]
    %v102 = vld [vmem:[%s3 + $0xa0] sm:$0xff]
    %v103 = vld [vmem:[%s3 + $0xa8] sm:$0xff]
    %v104 = vld [vmem:[%s3 + $0xb0] sm:$0xff]
    %v105 = vld [vmem:[%s3 + $0xb8] sm:$0xff]
    %v106 = vld [vmem:[%s3 + $0xc0] sm:$0xff]
    %v107 = vld [vmem:[%s3 + $0xc8] sm:$0xff]
    %v108 = vld [vmem:[%s3 + $0xd0] sm:$0xff]
    %v109 = vld [vmem:[%s3 + $0xd8] sm:$0xff]
    %v110 = vld [vmem:[%s3 + $0xe0] sm:$0xff]
    %v111 = vld [vmem:[%s3 + $0xe8] sm:$0xff]
    %v112 = vld [vmem:[%s3 + $0xf0] sm:$0xff]
    %v113 = vld [vmem:[%s3 + $0xf8] sm:$0xff]
    %v114 = vld [vmem:[%s4] sm:$0x1]
    %v116 = vperm.slane %v114, 0
    %118 = vmatpush.msra.mxu0 %v97
    %119 = vmatpush.msra.mxu0 %v96
    %120 = vmatpush.msra.mxu0 %v95
    %121 = vmatpush.msra.mxu0 %v94
    %122 = vmatpush.msra.mxu0 %v93
    %123 = vmatpush.msra.mxu0 %v92
    %124 = vmatpush.msra.mxu0 %v91
    %125 = vmatpush.msra.mxu0 %v90
    %126 = vmatpush.msra.mxu0 %v89
    %127 = vmatpush.msra.mxu0 %v88
    %128 = vmatpush.msra.mxu0 %v87
    %129 = vmatpush.msra.mxu0 %v86
    %130 = vmatpush.msra.mxu0 %v85
    %131 = vmatpush.msra.mxu0 %v84
    %132 = vmatpush.msra.mxu0 %v83
    %133 = vmatpush.msra.mxu0 %v82
    %134 = vmatmul.f32.gmra.mxu0 %v80
    %v135 = vpop.f32.mrf.mxu0
    %v136 = vadd.f32 %v116, %v135
    %137 = vdwg.mxu0
    %138 = vmatpush.msra.mxu0 %v113
    %139 = vmatpush.msra.mxu0 %v112
    %140 = vmatpush.msra.mxu0 %v111
    %141 = vmatpush.msra.mxu0 %v110
    %142 = vmatpush.msra.mxu0 %v109
    %143 = vmatpush.msra.mxu0 %v108
    %144 = vmatpush.msra.mxu0 %v107
    %145 = vmatpush.msra.mxu0 %v106
    %146 = vmatpush.msra.mxu0 %v105
    %147 = vmatpush.msra.mxu0 %v104
    %148 = vmatpush.msra.mxu0 %v103
    %149 = vmatpush.msra.mxu0 %v102
    %150 = vmatpush.msra.mxu0 %v101
    %151 = vmatpush.msra.mxu0 %v100
    %152 = vmatpush.msra.mxu0 %v99
    %153 = vmatpush.msra.mxu0 %v98
    %154 = vmatmul.f32.gmra.mxu0 %v81
    %v155 = vpop.f32.mrf.mxu0
    %v156 = vadd.f32 %v136, %v155
    %157 = vdwg.mxu0
    %vm158 = vcmask 80896
    %159 = vst.msk [vmem:[#allocation2] sm:$0xff] %vm158, %v156
    // Predicated region
    $region22: #{tpu_custom_call.1} parent=1 // pred_check
      _
    $region23: #{tpu_custom_call.1} parent=1 // pred_check_branch
      %161 = sbr.rel (0) target = $region25
    $region24: #{tpu_custom_call.1} parent=1 // pred_region
      %163 = vsyncadd [#allocation3], 0
      %s165 = sshll.u32 [#allocation2], 4
      %s166 = int_to_ptr.vmem [resolvable:$true] %s165
      %s167 = sshll.u32 %s5, 4
      %s168 = int_to_ptr.hbm [resolvable:$true] %s167
      %170 = dma.vmem_to_hbm [thread:$0]  %s166, 128, %s168, [#allocation3]
    $region25: #{tpu_custom_call.1} parent=1 // pred_fallthru
      _
    // Predicated region
    $region26: #{tpu_custom_call.1} parent=1 // pred_check
      _
    $region27: #{tpu_custom_call.1} parent=1 // pred_check_branch
      %172 = sbr.rel (0) target = $region29
    $region28: #{tpu_custom_call.1} parent=1 // pred_region
      %174 = dma.done [#allocation3], 128
    $region29: #{tpu_custom_call.1} parent=1 // pred_fallthru
      _
    %175 = vsyncpa [#allocation3], 1

</llo_original>
